<compile_context>
chip_gen: v6e
topology: v6e:2x2x1
jax: 0.10.0
libtpu: 0.0.40
codegen_flags: <defaults>
</compile_context>

<pallas_src>
import jax
import jax.numpy as jnp
from jax.experimental import pallas as pl
from jax.experimental.pallas import tpu as pltpu

EPS = 1e-5


def _fused_kernel(x_ref, g_ref, w_ref, gamma_ref, beta_ref, o_ref):
    # x_ref:     (Cin, P)    gated input, channels-major (free reshape of NCHW)
    # g_ref:     (1, Cin)    per-channel SE gate
    # w_ref:     (Cout, Cin) 1x1 conv weight
    # gamma_ref: (Cout, 1)
    # beta_ref:  (Cout, 1)
    # o_ref:     (Cout, P)
    # Fold the SE gate into the smaller operand (Cout*Cin < Cin*P).
    w_eff = w_ref[...] * g_ref[...]                                  # (Cout, Cin) f32

    # 1x1 conv as matmul on the MXU: bf16 operands, f32 accumulation.
    y = jnp.dot(w_eff.astype(jnp.bfloat16),
                x_ref[...].astype(jnp.bfloat16),
                preferred_element_type=jnp.float32)                  # (Cout, P) f32

    p = y.shape[1]
    inv_p = 1.0 / p
    # One-pass batch statistics over the spatial axis (biased variance).
    mean = jnp.sum(y, axis=1, keepdims=True) * inv_p                 # (Cout, 1)
    sumsq = jnp.sum(y * y, axis=1, keepdims=True) * inv_p            # (Cout, 1)
    var = sumsq - mean * mean
    # Fold normalization + affine into one scale/shift, single FMA on the tile.
    scale = jax.lax.rsqrt(var + EPS) * gamma_ref[...]                # (Cout, 1)
    shift = beta_ref[...] - mean * scale                             # (Cout, 1)
    o_ref[...] = y * scale + shift


def mul_conv_bn(x, gate, weight, gamma, beta):
    """x: (N, Cin, H, W); gate: (N, Cin, 1, 1); weight: (Cout, Cin, 1, 1)."""
    n, cin, h, w = x.shape
    cout = weight.shape[0]
    p = n * h * w

    # N == 1 (module spec); the gate layout below assumes a single sample.
    # All reshapes here are metadata-only (no transposes / HBM round-trips).
    x2d = x.reshape(cin, p).astype(jnp.float32)            # (Cin, P)
    g2d = gate.reshape(1, cin).astype(jnp.float32)         # (1, Cin)
    w2d = weight.reshape(cout, cin).astype(jnp.float32)    # (Cout, Cin)
    gamma2d = gamma.reshape(cout, 1).astype(jnp.float32)
    beta2d = beta.reshape(cout, 1).astype(jnp.float32)

    cost = pl.CostEstimate(
        flops=2 * p * cin * cout,
        transcendentals=cout,  # rsqrt per output channel
        bytes_accessed=4 * (cin * p + cin + cout * cin + 2 * cout + cout * p),
    )

    out2d = pl.pallas_call(
        _fused_kernel,
        out_shape=jax.ShapeDtypeStruct((cout, p), jnp.float32),
        grid=(1,),
        in_specs=[
            pl.BlockSpec((cin, p), lambda i: (0, 0)),
            pl.BlockSpec((1, cin), lambda i: (0, 0)),
            pl.BlockSpec((cout, cin), lambda i: (0, 0)),
            pl.BlockSpec((cout, 1), lambda i: (0, 0)),
            pl.BlockSpec((cout, 1), lambda i: (0, 0)),
        ],
        out_specs=pl.BlockSpec((cout, p), lambda i: (0, 0)),
        compiler_params=pltpu.CompilerParams(
            dimension_semantics=("arbitrary",)),
        cost_estimate=cost,
    )(x2d, g2d, w2d, gamma2d, beta2d)

    # (Cout, P) -> NCHW, also a free reshape.
    return out2d.reshape(n, cout, h, w)


if __name__ == "__main__":
    key = jax.random.PRNGKey(0)
    k1, k2, k3, k4, k5 = jax.random.split(key, 5)

    N, Cin, Cout, H, W = 1, 336, 112, 14, 14

    x152 = jax.random.normal(k1, (N, Cin, H, W), dtype=jnp.float32)
    x157 = jax.random.normal(k2, (N, Cin, 1, 1), dtype=jnp.float32)

    # Deterministic parameter init (synthetic; not a checkpoint load).
    conv_w = jax.random.normal(k3, (Cout, Cin, 1, 1), dtype=jnp.float32) * 0.05
    bn_gamma = 1.0 + 0.1 * jax.random.normal(k4, (Cout,), dtype=jnp.float32)
    bn_beta = 0.1 * jax.random.normal(k5, (Cout,), dtype=jnp.float32)

    out = mul_conv_bn(x152, x157, conv_w, bn_gamma, bn_beta)
    out = jax.block_until_ready(out)

    # Pure-f32 reference (training-mode batchnorm, biased variance).
    xg = x152 * x157
    y_ref = jnp.einsum("nchw,oc->nohw", xg, conv_w.reshape(Cout, Cin))
    mean = jnp.mean(y_ref, axis=(0, 2, 3), keepdims=True)
    var = jnp.mean((y_ref - mean) ** 2, axis=(0, 2, 3), keepdims=True)
    ref = (y_ref - mean) * jax.lax.rsqrt(var + EPS) \
        * bn_gamma.reshape(1, Cout, 1, 1) + bn_beta.reshape(1, Cout, 1, 1)

    assert out.shape == (N, Cout, H, W)
    # Kernel uses bf16 MXU operands (f32 accumulation), so tolerance is looser
    # than a pure-f32 comparison; observed error is ~1e-3 on normalized outputs.
    assert jnp.allclose(out, ref, atol=2e-2, rtol=2e-2)

    print("KERNEL_OK")
</pallas_src>

<mosaic_0001>
module attributes {stable_mosaic.version = 11 : i64} {
  func.func @_fused_kernel(%arg0: i32, %arg1: memref<336x196xf32, #tpu.memory_space<vmem>>, %arg2: memref<1x336xf32, #tpu.memory_space<vmem>>, %arg3: memref<112x336xf32, #tpu.memory_space<vmem>>, %arg4: memref<112x1xf32, #tpu.memory_space<vmem>>, %arg5: memref<112x1xf32, #tpu.memory_space<vmem>>, %arg6: memref<112x196xf32, #tpu.memory_space<vmem>>) attributes {dimension_semantics = [#tpu.dimension_semantics<arbitrary>], iteration_bounds = array<i64: 1>, scalar_prefetch = 0 : i64, scratch_operands = 0 : i64, tpu.core_type = #tpu.core_type<tc>, window_params = [{pipeline_mode = #tpu.pipeline_mode<synchronous>, transform_indices = @transform_0, window_bounds = array<i64: 336, 196>}, {pipeline_mode = #tpu.pipeline_mode<synchronous>, transform_indices = @transform_1, window_bounds = array<i64: 1, 336>}, {pipeline_mode = #tpu.pipeline_mode<synchronous>, transform_indices = @transform_2, window_bounds = array<i64: 112, 336>}, {pipeline_mode = #tpu.pipeline_mode<synchronous>, transform_indices = @transform_3, window_bounds = array<i64: 112, 1>}, {pipeline_mode = #tpu.pipeline_mode<synchronous>, transform_indices = @transform_4, window_bounds = array<i64: 112, 1>}, {pipeline_mode = #tpu.pipeline_mode<synchronous>, transform_indices = @transform_5, window_bounds = array<i64: 112, 196>}]} {
    %c0 = arith.constant 0 : index
    %c0_0 = arith.constant 0 : index
    %0 = vector.load %arg3[%c0, %c0_0] : memref<112x336xf32, #tpu.memory_space<vmem>>, vector<112x336xf32>
    %c0_1 = arith.constant 0 : index
    %c0_2 = arith.constant 0 : index
    %1 = vector.load %arg2[%c0_1, %c0_2] : memref<1x336xf32, #tpu.memory_space<vmem>>, vector<1x336xf32>
    %2 = vector.broadcast %1 : vector<1x336xf32> to vector<112x336xf32>
    %3 = arith.mulf %0, %2 : vector<112x336xf32>
    %4 = arith.truncf %3 : vector<112x336xf32> to vector<112x336xbf16>
    %c0_3 = arith.constant 0 : index
    %c0_4 = arith.constant 0 : index
    %5 = vector.load %arg1[%c0_3, %c0_4] : memref<336x196xf32, #tpu.memory_space<vmem>>, vector<336x196xf32>
    %6 = arith.truncf %5 : vector<336x196xf32> to vector<336x196xbf16>
    %cst = arith.constant dense<0.000000e+00> : vector<112x196xf32>
    %7 = tpu.matmul %4, %6, %cst {dimension_numbers = #tpu.dot_dimension_numbers<[1], [0], [0], [1], [0, 0, 1, 1], [], []>} : vector<112x336xbf16>, vector<336x196xbf16>, vector<112x196xf32> -> vector<112x196xf32>
    %cst_5 = arith.constant dense<0.000000e+00> : vector<112xf32>
    %8 = vector.multi_reduction <add>, %7, %cst_5 [1] : vector<112x196xf32> to vector<112xf32>
    %9 = vector.shape_cast %8 : vector<112xf32> to vector<112x1xf32>
    %cst_6 = arith.constant 0.00510204071 : f32
    %10 = vector.broadcast %cst_6 : f32 to vector<112x1xf32>
    %11 = arith.mulf %9, %10 : vector<112x1xf32>
    %12 = arith.mulf %7, %7 : vector<112x196xf32>
    %cst_7 = arith.constant dense<0.000000e+00> : vector<112xf32>
    %13 = vector.multi_reduction <add>, %12, %cst_7 [1] : vector<112x196xf32> to vector<112xf32>
    %14 = vector.shape_cast %13 : vector<112xf32> to vector<112x1xf32>
    %cst_8 = arith.constant 0.00510204071 : f32
    %15 = vector.broadcast %cst_8 : f32 to vector<112x1xf32>
    %16 = arith.mulf %14, %15 : vector<112x1xf32>
    %17 = arith.mulf %11, %11 : vector<112x1xf32>
    %18 = arith.subf %16, %17 : vector<112x1xf32>
    %cst_9 = arith.constant 9.99999974E-6 : f32
    %19 = vector.broadcast %cst_9 : f32 to vector<112x1xf32>
    %20 = arith.addf %18, %19 : vector<112x1xf32>
    %21 = math.rsqrt %20 : vector<112x1xf32>
    %c0_10 = arith.constant 0 : index
    %c0_11 = arith.constant 0 : index
    %22 = vector.load %arg4[%c0_10, %c0_11] : memref<112x1xf32, #tpu.memory_space<vmem>>, vector<112x1xf32>
    %23 = arith.mulf %21, %22 : vector<112x1xf32>
    %c0_12 = arith.constant 0 : index
    %c0_13 = arith.constant 0 : index
    %24 = vector.load %arg5[%c0_12, %c0_13] : memref<112x1xf32, #tpu.memory_space<vmem>>, vector<112x1xf32>
    %25 = arith.mulf %11, %23 : vector<112x1xf32>
    %26 = arith.subf %24, %25 : vector<112x1xf32>
    %27 = vector.broadcast %23 : vector<112x1xf32> to vector<112x196xf32>
    %28 = arith.mulf %7, %27 : vector<112x196xf32>
    %29 = vector.broadcast %26 : vector<112x1xf32> to vector<112x196xf32>
    %30 = arith.addf %28, %29 : vector<112x196xf32>
    %c0_14 = arith.constant 0 : index
    %c0_15 = arith.constant 0 : index
    %31 = vector.load %arg6[%c0_14, %c0_15] : memref<112x196xf32, #tpu.memory_space<vmem>>, vector<112x196xf32>
    tpu.vector_store %arg6[%c0_14, %c0_15], %30 {strides = array<i32>} : memref<112x196xf32, #tpu.memory_space<vmem>>, vector<112x196xf32>,
    return
  }
  func.func @transform_0(%arg0: i32) -> (i32, i32) {
    %c0_i32 = arith.constant 0 : i32
    %c0_i32_0 = arith.constant 0 : i32
    %c0_i32_1 = arith.constant 0 : i32
    return %c0_i32, %c0_i32_0 : i32, i32
  }
  func.func @transform_1(%arg0: i32) -> (i32, i32) {
    %c0_i32 = arith.constant 0 : i32
    %c0_i32_0 = arith.constant 0 : i32
    %c0_i32_1 = arith.constant 0 : i32
    return %c0_i32, %c0_i32_0 : i32, i32
  }
  func.func @transform_2(%arg0: i32) -> (i32, i32) {
    %c0_i32 = arith.constant 0 : i32
    %c0_i32_0 = arith.constant 0 : i32
    %c0_i32_1 = arith.constant 0 : i32
    return %c0_i32, %c0_i32_0 : i32, i32
  }
  func.func @transform_3(%arg0: i32) -> (i32, i32) {
    %c0_i32 = arith.constant 0 : i32
    %c0_i32_0 = arith.constant 0 : i32
    %c0_i32_1 = arith.constant 0 : i32
    return %c0_i32, %c0_i32_0 : i32, i32
  }
  func.func @transform_4(%arg0: i32) -> (i32, i32) {
    %c0_i32 = arith.constant 0 : i32
    %c0_i32_0 = arith.constant 0 : i32
    %c0_i32_1 = arith.constant 0 : i32
    return %c0_i32, %c0_i32_0 : i32, i32
  }
  func.func @transform_5(%arg0: i32) -> (i32, i32) {
    %c0_i32 = arith.constant 0 : i32
    %c0_i32_0 = arith.constant 0 : i32
    %c0_i32_1 = arith.constant 0 : i32
    return %c0_i32, %c0_i32_0 : i32, i32
  }
}

</mosaic_0001>

<llo_original>
// kernel: tpu_custom_call.1
$region0: #{tpu_custom_call.1}
  #allocation0 [shape = 'u32[]', space=smem, size = 0x4, offset = 0x4, fixed_abs, tag = 'smem constant byte address 0x4 - core index']
  #allocation1 [shape = 'u32[144,128]{1,0:T(1,128)}', space=vmem, size = 0x12000, scoped, tag = 'internal scratch']
  %s0 = inlined_call_operand.vmem [shape: f32[336,196], index: 0, kind: input, shape index: {}]
  %s1 = inlined_call_operand.vmem [shape: f32[1,336], index: 1, kind: input, shape index: {}]
  %s2 = inlined_call_operand.vmem [shape: f32[112,336], index: 2, kind: input, shape index: {}]
  %s3 = inlined_call_operand.vmem [shape: f32[112,1], index: 3, kind: input, shape index: {}]
  %s4 = inlined_call_operand.vmem [shape: f32[112,1], index: 4, kind: input, shape index: {}]
  %s5 = inlined_call_operand.vmem [shape: f32[112,196], index: 5, kind: output, shape index: {}]
  %s6 = sld [smem:[#allocation0]]
  $region30: #{tpu_custom_call.1} parent=0
    _
  %s8 = ssub.s32 1, %s6
  %s9 = scalar_select 0, %s8, %s6
  // Predicated region
  $region2: #{tpu_custom_call.1} parent=0 // pred_check
    _
  $region3: #{tpu_custom_call.1} parent=0 // pred_check_branch
    %11 = sbr.rel (0) target = $region5
  $region4: #{tpu_custom_call.1} parent=0 // pred_region
    _
  $region5: #{tpu_custom_call.1} parent=0 // pred_fallthru
    _
  // Predicated region
  $region6: #{tpu_custom_call.1} parent=0 // pred_check
    _
  $region7: #{tpu_custom_call.1} parent=0 // pred_check_branch
    %13 = sbr.rel (0) target = $region9
  $region8: #{tpu_custom_call.1} parent=0 // pred_region
    _
  $region9: #{tpu_custom_call.1} parent=0 // pred_fallthru
    _
  // Predicated region
  $region10: #{tpu_custom_call.1} parent=0 // pred_check
    _
  $region11: #{tpu_custom_call.1} parent=0 // pred_check_branch
    %15 = sbr.rel (0) target = $region13
  $region12: #{tpu_custom_call.1} parent=0 // pred_region
    _
  $region13: #{tpu_custom_call.1} parent=0 // pred_fallthru
    _
  // Predicated region
  $region14: #{tpu_custom_call.1} parent=0 // pred_check
    _
  $region15: #{tpu_custom_call.1} parent=0 // pred_check_branch
    %17 = sbr.rel (0) target = $region17
  $region16: #{tpu_custom_call.1} parent=0 // pred_region
    _
  $region17: #{tpu_custom_call.1} parent=0 // pred_fallthru
    _
  // Predicated region
  $region18: #{tpu_custom_call.1} parent=0 // pred_check
    _
  $region19: #{tpu_custom_call.1} parent=0 // pred_check_branch
    %19 = sbr.rel (0) target = $region21
  $region20: #{tpu_custom_call.1} parent=0 // pred_region
    _
  $region21: #{tpu_custom_call.1} parent=0 // pred_fallthru
    _
  %v21 = vld [vmem:[%s2] sm:$0xff]
  %v22 = vld [vmem:[%s2 + $0x8] sm:$0xff]
  %v23 = vld [vmem:[%s2 + $0x10] sm:$0xff]
  %v24 = vld [vmem:[%s2 + $0x18] sm:$0xff]
  %v25 = vld [vmem:[%s2 + $0x20] sm:$0xff]
  %v26 = vld [vmem:[%s2 + $0x28] sm:$0xff]
  %v27 = vld [vmem:[%s2 + $0x30] sm:$0xff]
  %v28 = vld [vmem:[%s2 + $0x38] sm:$0xff]
  %v29 = vld [vmem:[%s2 + $0x40] sm:$0xff]
  %v30 = vld [vmem:[%s2 + $0x48] sm:$0xff]
  %v31 = vld [vmem:[%s2 + $0x50] sm:$0xff]
  %v32 = vld [vmem:[%s2 + $0x58] sm:$0xff]
  %v33 = vld [vmem:[%s2 + $0x60] sm:$0xff]
  %v34 = vld [vmem:[%s2 + $0x68] sm:$0xff]
  %v35 = vld [vmem:[%s2 + $0x70] sm:$0xff]
  %v36 = vld [vmem:[%s2 + $0x78] sm:$0xff]
  %v37 = vld [vmem:[%s2 + $0x80] sm:$0xff]
  %v38 = vld [vmem:[%s2 + $0x88] sm:$0xff]
  %v39 = vld [vmem:[%s2 + $0x90] sm:$0xff]
  %v40 = vld [vmem:[%s2 + $0x98] sm:$0xff]
  %v41 = vld [vmem:[%s2 + $0xa0] sm:$0xff]
  %v42 = vld [vmem:[%s2 + $0xa8] sm:$0xff]
  %v43 = vld [vmem:[%s2 + $0xb0] sm:$0xff]
  %v44 = vld [vmem:[%s2 + $0xb8] sm:$0xff]
  %v45 = vld [vmem:[%s2 + $0xc0] sm:$0xff]
  %v46 = vld [vmem:[%s2 + $0xc8] sm:$0xff]
  %v47 = vld [vmem:[%s2 + $0xd0] sm:$0xff]
  %v48 = vld [vmem:[%s2 + $0xd8] sm:$0xff]
  %v49 = vld [vmem:[%s2 + $0xe0] sm:$0xff]
  %v50 = vld [vmem:[%s2 + $0xe8] sm:$0xff]
  %v51 = vld [vmem:[%s2 + $0xf0] sm:$0xff]
  %v52 = vld [vmem:[%s2 + $0xf8] sm:$0xff]
  %v53 = vld [vmem:[%s2 + $0x100] sm:$0xff]
  %v54 = vld [vmem:[%s2 + $0x108] sm:$0xff]
  %v55 = vld [vmem:[%s2 + $0x110] sm:$0xff]
  %v56 = vld [vmem:[%s2 + $0x118] sm:$0xff]
  %v57 = vld [vmem:[%s2 + $0x120] sm:$0xff]
  %v58 = vld [vmem:[%s2 + $0x128] sm:$0xff]
  %v59 = vld [vmem:[%s2 + $0x130] sm:$0xff]
  %v60 = vld [vmem:[%s2 + $0x138] sm:$0xff]
  %v61 = vld [vmem:[%s2 + $0x140] sm:$0xff]
  %v62 = vld [vmem:[%s2 + $0x148] sm:$0xff]
  %v63 = vld [vmem:[%s1] sm:$0x7]
  %v65 = vlaneseq
  %v66 = vshrl.u32 %v65, 7
  %v67 = vsub.s32 0, %v66
  %v68 = vrot.slane %v63, %v67
  %v69 = vlaneseq
  %v70 = vshrl.u32 %v69, 7
  %v71 = vsub.s32 1, %v70
  %v72 = vrot.slane %v63, %v71
  %v73 = vlaneseq
  %v74 = vshrl.u32 %v73, 7
  %v75 = vsub.s32 2, %v74
  %v76 = vrot.slane %v63, %v75
  %v80 = vmul.f32 %v21, %v68
  %v81 = vmul.f32 %v22, %v72
  %v82 = vmul.f32 %v23, %v76
  %v83 = vmul.f32 %v24, %v68
  %v84 = vmul.f32 %v25, %v72
  %v85 = vmul.f32 %v26, %v76
  %v86 = vmul.f32 %v27, %v68
  %v87 = vmul.f32 %v28, %v72
  %v88 = vmul.f32 %v29, %v76
  %v89 = vmul.f32 %v30, %v68
  %v90 = vmul.f32 %v31, %v72
  %v91 = vmul.f32 %v32, %v76
  %v92 = vmul.f32 %v33, %v68
  %v93 = vmul.f32 %v34, %v72
  %v94 = vmul.f32 %v35, %v76
  %v95 = vmul.f32 %v36, %v68
  %v96 = vmul.f32 %v37, %v72
  %v97 = vmul.f32 %v38, %v76
  %v98 = vmul.f32 %v39, %v68
  %v99 = vmul.f32 %v40, %v72
  %v100 = vmul.f32 %v41, %v76
  %v101 = vmul.f32 %v42, %v68
  %v102 = vmul.f32 %v43, %v72
  %v103 = vmul.f32 %v44, %v76
  %v104 = vmul.f32 %v45, %v68
  %v105 = vmul.f32 %v46, %v72
  %v106 = vmul.f32 %v47, %v76
  %v107 = vmul.f32 %v48, %v68
  %v108 = vmul.f32 %v49, %v72
  %v109 = vmul.f32 %v50, %v76
  %v110 = vmul.f32 %v51, %v68
  %v111 = vmul.f32 %v52, %v72
  %v112 = vmul.f32 %v53, %v76
  %v113 = vmul.f32 %v54, %v68
  %v114 = vmul.f32 %v55, %v72
  %v115 = vmul.f32 %v56, %v76
  %v116 = vmul.f32 %v57, %v68
  %v117 = vmul.f32 %v58, %v72
  %v118 = vmul.f32 %v59, %v76
  %v119 = vmul.f32 %v60, %v68
  %v120 = vmul.f32 %v61, %v72
  %v121 = vmul.f32 %v62, %v76
  %v122 = vpack.c.bf16 %v83, %v80
  %v123 = vpack.c.bf16 %v84, %v81
  %v124 = vpack.c.bf16 %v85, %v82
  %v125 = vpack.c.bf16 %v89, %v86
  %v126 = vpack.c.bf16 %v90, %v87
  %v127 = vpack.c.bf16 %v91, %v88
  %v128 = vpack.c.bf16 %v95, %v92
  %v129 = vpack.c.bf16 %v96, %v93
  %v130 = vpack.c.bf16 %v97, %v94
  %v131 = vpack.c.bf16 %v101, %v98
  %v132 = vpack.c.bf16 %v102, %v99
  %v133 = vpack.c.bf16 %v103, %v100
  %v134 = vpack.c.bf16 %v107, %v104
  %v135 = vpack.c.bf16 %v108, %v105
  %v136 = vpack.c.bf16 %v109, %v106
  %v137 = vpack.c.bf16 %v113, %v110
  %v138 = vpack.c.bf16 %v114, %v111
  %v139 = vpack.c.bf16 %v115, %v112
  %v140 = vpack.c.bf16 %v119, %v116
  %v141 = vpack.c.bf16 %v120, %v117
  %v142 = vpack.c.bf16 %v121, %v118
  %v143 = vld [vmem:[%s0] sm:$0xff]
  %v144 = vld [vmem:[%s0 + $0x8] sm:$0xff]
  %v145 = vld [vmem:[%s0 + $0x10] sm:$0xff]
  %v146 = vld [vmem:[%s0 + $0x18] sm:$0xff]
  %v147 = vld [vmem:[%s0 + $0x20] sm:$0xff]
  %v148 = vld [vmem:[%s0 + $0x28] sm:$0xff]
  %v149 = vld [vmem:[%s0 + $0x30] sm:$0xff]
  %v150 = vld [vmem:[%s0 + $0x38] sm:$0xff]
  %v151 = vld [vmem:[%s0 + $0x40] sm:$0xff]
  %v152 = vld [vmem:[%s0 + $0x48] sm:$0xff]
  %v153 = vld [vmem:[%s0 + $0x50] sm:$0xff]
  %v154 = vld [vmem:[%s0 + $0x58] sm:$0xff]
  %v155 = vld [vmem:[%s0 + $0x60] sm:$0xff]
  %v156 = vld [vmem:[%s0 + $0x68] sm:$0xff]
  %v157 = vld [vmem:[%s0 + $0x70] sm:$0xff]
  %v158 = vld [vmem:[%s0 + $0x78] sm:$0xff]
  %v159 = vld [vmem:[%s0 + $0x80] sm:$0xff]
  %v160 = vld [vmem:[%s0 + $0x88] sm:$0xff]
  %v161 = vld [vmem:[%s0 + $0x90] sm:$0xff]
  %v162 = vld [vmem:[%s0 + $0x98] sm:$0xff]
  %v163 = vld [vmem:[%s0 + $0xa0] sm:$0xff]
  %v164 = vld [vmem:[%s0 + $0xa8] sm:$0xff]
  %v165 = vld [vmem:[%s0 + $0xb0] sm:$0xff]
  %v166 = vld [vmem:[%s0 + $0xb8] sm:$0xff]
  %v167 = vld [vmem:[%s0 + $0xc0] sm:$0xff]
  %v168 = vld [vmem:[%s0 + $0xc8] sm:$0xff]
  %v169 = vld [vmem:[%s0 + $0xd0] sm:$0xff]
  %v170 = vld [vmem:[%s0 + $0xd8] sm:$0xff]
  %v171 = vld [vmem:[%s0 + $0xe0] sm:$0xff]
  %v172 = vld [vmem:[%s0 + $0xe8] sm:$0xff]
  %v173 = vld [vmem:[%s0 + $0xf0] sm:$0xff]
  %v174 = vld [vmem:[%s0 + $0xf8] sm:$0xff]
  %v175 = vld [vmem:[%s0 + $0x100] sm:$0xff]
  %v176 = vld [vmem:[%s0 + $0x108] sm:$0xff]
  %v177 = vld [vmem:[%s0 + $0x110] sm:$0xff]
  %v178 = vld [vmem:[%s0 + $0x118] sm:$0xff]
  %v179 = vld [vmem:[%s0 + $0x120] sm:$0xff]
  %v180 = vld [vmem:[%s0 + $0x128] sm:$0xff]
  %v181 = vld [vmem:[%s0 + $0x130] sm:$0xff]
  %v182 = vld [vmem:[%s0 + $0x138] sm:$0xff]
  %v183 = vld [vmem:[%s0 + $0x140] sm:$0xff]
  %v184 = vld [vmem:[%s0 + $0x148] sm:$0xff]
  %v185 = vld [vmem:[%s0 + $0x150] sm:$0xff]
  %v186 = vld [vmem:[%s0 + $0x158] sm:$0xff]
  %v187 = vld [vmem:[%s0 + $0x160] sm:$0xff]
  %v188 = vld [vmem:[%s0 + $0x168] sm:$0xff]
  %v189 = vld [vmem:[%s0 + $0x170] sm:$0xff]
  %v190 = vld [vmem:[%s0 + $0x178] sm:$0xff]
  %v191 = vld [vmem:[%s0 + $0x180] sm:$0xff]
  %v192 = vld [vmem:[%s0 + $0x188] sm:$0xff]
  %v193 = vld [vmem:[%s0 + $0x190] sm:$0xff]
  %v194 = vld [vmem:[%s0 + $0x198] sm:$0xff]
  %v195 = vld [vmem:[%s0 + $0x1a0] sm:$0xff]
  %v196 = vld [vmem:[%s0 + $0x1a8] sm:$0xff]
  %v197 = vld [vmem:[%s0 + $0x1b0] sm:$0xff]
  %v198 = vld [vmem:[%s0 + $0x1b8] sm:$0xff]
  %v199 = vld [vmem:[%s0 + $0x1c0] sm:$0xff]
  %v200 = vld [vmem:[%s0 + $0x1c8] sm:$0xff]
  %v201 = vld [vmem:[%s0 + $0x1d0] sm:$0xff]
  %v202 = vld [vmem:[%s0 + $0x1d8] sm:$0xff]
  %v203 = vld [vmem:[%s0 + $0x1e0] sm:$0xff]
  %v204 = vld [vmem:[%s0 + $0x1e8] sm:$0xff]
  %v205 = vld [vmem:[%s0 + $0x1f0] sm:$0xff]
  %v206 = vld [vmem:[%s0 + $0x1f8] sm:$0xff]
  %v207 = vld [vmem:[%s0 + $0x200] sm:$0xff]
  %v208 = vld [vmem:[%s0 + $0x208] sm:$0xff]
  %v209 = vld [vmem:[%s0 + $0x210] sm:$0xff]
  %v210 = vld [vmem:[%s0 + $0x218] sm:$0xff]
  %v211 = vld [vmem:[%s0 + $0x220] sm:$0xff]
  %v212 = vld [vmem:[%s0 + $0x228] sm:$0xff]
  %v213 = vld [vmem:[%s0 + $0x230] sm:$0xff]
  %v214 = vld [vmem:[%s0 + $0x238] sm:$0xff]
  %v215 = vld [vmem:[%s0 + $0x240] sm:$0xff]
  %v216 = vld [vmem:[%s0 + $0x248] sm:$0xff]
  %v217 = vld [vmem:[%s0 + $0x250] sm:$0xff]
  %v218 = vld [vmem:[%s0 + $0x258] sm:$0xff]
  %v219 = vld [vmem:[%s0 + $0x260] sm:$0xff]
  %v220 = vld [vmem:[%s0 + $0x268] sm:$0xff]
  %v221 = vld [vmem:[%s0 + $0x270] sm:$0xff]
  %v222 = vld [vmem:[%s0 + $0x278] sm:$0xff]
  %v223 = vld [vmem:[%s0 + $0x280] sm:$0xff]
  %v224 = vld [vmem:[%s0 + $0x288] sm:$0xff]
  %v225 = vld [vmem:[%s0 + $0x290] sm:$0xff]
  %v226 = vld [vmem:[%s0 + $0x298] sm:$0xff]
  %v227 = vpack.c.bf16 %v145, %v143
  %v228 = vpack.c.bf16 %v146, %v144
  %v229 = vpack.c.bf16 %v149, %v147
  %v230 = vpack.c.bf16 %v150, %v148
  %v231 = vpack.c.bf16 %v153, %v151
  %v232 = vpack.c.bf16 %v154, %v152
  %v233 = vpack.c.bf16 %v157, %v155
  %v234 = vpack.c.bf16 %v158, %v156
  %v235 = vpack.c.bf16 %v161, %v159
  %v236 = vpack.c.bf16 %v162, %v160
  %v237 = vpack.c.bf16 %v165, %v163
  %v238 = vpack.c.bf16 %v166, %v164
  %v239 = vpack.c.bf16 %v169, %v167
  %v240 = vpack.c.bf16 %v170, %v168
  %v241 = vpack.c.bf16 %v173, %v171
  %v242 = vpack.c.bf16 %v174, %v172
  %v243 = vpack.c.bf16 %v177, %v175
  %v244 = vpack.c.bf16 %v178, %v176
  %v245 = vpack.c.bf16 %v181, %v179
  %v246 = vpack.c.bf16 %v182, %v180
  %v247 = vpack.c.bf16 %v185, %v183
  %v248 = vpack.c.bf16 %v186, %v184
  %v249 = vpack.c.bf16 %v189, %v187
  %v250 = vpack.c.bf16 %v190, %v188
  %v251 = vpack.c.bf16 %v193, %v191
  %v252 = vpack.c.bf16 %v194, %v192
  %v253 = vpack.c.bf16 %v197, %v195
  %v254 = vpack.c.bf16 %v198, %v196
  %v255 = vpack.c.bf16 %v201, %v199
  %v256 = vpack.c.bf16 %v202, %v200
  %v257 = vpack.c.bf16 %v205, %v203
  %v258 = vpack.c.bf16 %v206, %v204
  %v259 = vpack.c.bf16 %v209, %v207
  %v260 = vpack.c.bf16 %v210, %v208
  %v261 = vpack.c.bf16 %v213, %v211
  %v262 = vpack.c.bf16 %v214, %v212
  %v263 = vpack.c.bf16 %v217, %v215
  %v264 = vpack.c.bf16 %v218, %v216
  %v265 = vpack.c.bf16 %v221, %v219
  %v266 = vpack.c.bf16 %v222, %v220
  %v267 = vpack.c.bf16 %v225, %v223
  %v268 = vpack.c.bf16 %v226, %v224
  %vm269 = vcmask 654336
  %v271 = vsel %vm269, %v124, 0
  %v274 = vsel %vm269, %v127, 0
  %v277 = vsel %vm269, %v130, 0
  %v280 = vsel %vm269, %v133, 0
  %v283 = vsel %vm269, %v136, 0
  %v286 = vsel %vm269, %v139, 0
  %v289 = vsel %vm269, %v142, 0
  %291 = vmatprep.subr.bf16.mxu0 %v242
  %292 = vmatpush1.bf16.msra.mxu0 %v241
  %293 = vmatprep.subr.bf16.mxu0 %v240
  %294 = vmatpush1.bf16.msra.mxu0 %v239
  %295 = vmatprep.subr.bf16.mxu0 %v238
  %296 = vmatpush1.bf16.msra.mxu0 %v237
  %297 = vmatprep.subr.bf16.mxu0 %v236
  %298 = vmatpush1.bf16.msra.mxu0 %v235
  %299 = vmatprep.subr.bf16.mxu0 %v234
  %300 = vmatpush1.bf16.msra.mxu0 %v233
  %301 = vmatprep.subr.bf16.mxu0 %v232
  %302 = vmatpush1.bf16.msra.mxu0 %v231
  %303 = vmatprep.subr.bf16.mxu0 %v230
  %304 = vmatpush1.bf16.msra.mxu0 %v229
  %305 = vmatprep.subr.bf16.mxu0 %v228
  %306 = vmatpush1.bf16.msra.mxu0 %v227
  %307 = vmatprep.subr.bf16.mxu0 %v258
  %308 = vmatpush2.bf16.msra.mxu0 %v257
  %309 = vmatprep.subr.bf16.mxu0 %v256
  %310 = vmatpush2.bf16.msra.mxu0 %v255
  %311 = vmatprep.subr.bf16.mxu0 %v254
  %312 = vmatpush2.bf16.msra.mxu0 %v253
  %313 = vmatprep.subr.bf16.mxu0 %v252
  %314 = vmatpush2.bf16.msra.mxu0 %v251
  %315 = vmatprep.subr.bf16.mxu0 %v250
  %316 = vmatpush2.bf16.msra.mxu0 %v249
  %317 = vmatprep.subr.bf16.mxu0 %v248
  %318 = vmatpush2.bf16.msra.mxu0 %v247
  %319 = vmatprep.subr.bf16.mxu0 %v246
  %320 = vmatpush2.bf16.msra.mxu0 %v245
  %321 = vmatprep.subr.bf16.mxu0 %v244
  %322 = vmatpush2.bf16.msra.mxu0 %v243
  %323 = vmatprep.mubr.bf16.mxu0 %v123
  %324 = vmatmul.mubr.bf16.gmra.mxu0 %v122
  %v325 = vpop.f32.mrf.mxu0
  %v326 = vadd.f32 0.0, %v325
  %v327 = vpop.f32.mrf.mxu0
  %v328 = vadd.f32 0.0, %v327
  %v329 = vpop.f32.mrf.mxu0
  %v330 = vadd.f32 0.0, %v329
  %v331 = vpop.f32.mrf.mxu0
  %v332 = vadd.f32 0.0, %v331
  %333 = vmatprep.mubr.bf16.mxu0 %v126
  %334 = vmatmul.mubr.bf16.gmra.mxu0 %v125
  %v335 = vpop.f32.mrf.mxu0
  %v336 = vadd.f32 0.0, %v335
  %v337 = vpop.f32.mrf.mxu0
  %v338 = vadd.f32 0.0, %v337
  %v339 = vpop.f32.mrf.mxu0
  %v340 = vadd.f32 0.0, %v339
  %v341 = vpop.f32.mrf.mxu0
  %v342 = vadd.f32 0.0, %v341
  %343 = vmatprep.mubr.bf16.mxu0 %v129
  %344 = vmatmul.mubr.bf16.gmra.mxu0 %v128
  %v345 = vpop.f32.mrf.mxu0
  %v346 = vadd.f32 0.0, %v345
  %v347 = vpop.f32.mrf.mxu0
  %v348 = vadd.f32 0.0, %v347
  %v349 = vpop.f32.mrf.mxu0
  %v350 = vadd.f32 0.0, %v349
  %v351 = vpop.f32.mrf.mxu0
  %v352 = vadd.f32 0.0, %v351
  %353 = vmatprep.mubr.bf16.mxu0 %v132
  %354 = vmatmul.mubr.bf16.gmra.mxu0 %v131
  %v355 = vpop.f32.mrf.mxu0
  %v356 = vadd.f32 0.0, %v355
  %v357 = vpop.f32.mrf.mxu0
  %v358 = vadd.f32 0.0, %v357
  %v359 = vpop.f32.mrf.mxu0
  %v360 = vadd.f32 0.0, %v359
  %v361 = vpop.f32.mrf.mxu0
  %v362 = vadd.f32 0.0, %v361
  %363 = vmatprep.mubr.bf16.mxu0 %v135
  %364 = vmatmul.mubr.bf16.gmra.mxu0 %v134
  %v365 = vpop.f32.mrf.mxu0
  %v366 = vadd.f32 0.0, %v365
  %v367 = vpop.f32.mrf.mxu0
  %v368 = vadd.f32 0.0, %v367
  %v369 = vpop.f32.mrf.mxu0
  %v370 = vadd.f32 0.0, %v369
  %v371 = vpop.f32.mrf.mxu0
  %v372 = vadd.f32 0.0, %v371
  %373 = vmatprep.mubr.bf16.mxu0 %v138
  %374 = vmatmul.mubr.bf16.gmra.mxu0 %v137
  %v375 = vpop.f32.mrf.mxu0
  %v376 = vadd.f32 0.0, %v375
  %v377 = vpop.f32.mrf.mxu0
  %v378 = vadd.f32 0.0, %v377
  %v379 = vpop.f32.mrf.mxu0
  %v380 = vadd.f32 0.0, %v379
  %v381 = vpop.f32.mrf.mxu0
  %v382 = vadd.f32 0.0, %v381
  %383 = vmatprep.mubr.bf16.mxu0 %v141
  %384 = vmatmul.mubr.bf16.gmra.mxu0 %v140
  %v385 = vpop.f32.mrf.mxu0
  %v386 = vadd.f32 0.0, %v385
  %v387 = vpop.f32.mrf.mxu0
  %v388 = vadd.f32 0.0, %v387
  %v389 = vpop.f32.mrf.mxu0
  %v390 = vadd.f32 0.0, %v389
  %v391 = vpop.f32.mrf.mxu0
  %v392 = vadd.f32 0.0, %v391
  %393 = vdwg.mxu0
  %394 = vmatprep.subr.bf16.mxu0 0
  %395 = vmatpush1.bf16.msra.mxu0 0
  %396 = vmatprep.subr.bf16.mxu0 0
  %397 = vmatpush1.bf16.msra.mxu0 0
  %398 = vmatprep.subr.bf16.mxu0 0
  %399 = vmatpush1.bf16.msra.mxu0 0
  %400 = vmatprep.subr.bf16.mxu0 %v268
  %401 = vmatpush1.bf16.msra.mxu0 %v267
  %402 = vmatprep.subr.bf16.mxu0 %v266
  %403 = vmatpush1.bf16.msra.mxu0 %v265
  %404 = vmatprep.subr.bf16.mxu0 %v264
  %405 = vmatpush1.bf16.msra.mxu0 %v263
  %406 = vmatprep.subr.bf16.mxu0 %v262
  %407 = vmatpush1.bf16.msra.mxu0 %v261
  %408 = vmatprep.subr.bf16.mxu0 %v260
  %409 = vmatpush1.bf16.msra.mxu0 %v259
  %410 = vmatprep.subr.bf16.mxu0 0
  %411 = vmatpush2.bf16.msra.mxu0 0
  %412 = vmatprep.subr.bf16.mxu0 0
  %413 = vmatpush2.bf16.msra.mxu0 0
  %414 = vmatprep.subr.bf16.mxu0 0
  %415 = vmatpush2.bf16.msra.mxu0 0
  %416 = vmatprep.subr.bf16.mxu0 0
  %417 = vmatpush2.bf16.msra.mxu0 0
  %418 = vmatprep.subr.bf16.mxu0 0
  %419 = vmatpush2.bf16.msra.mxu0 0
  %420 = vmatprep.subr.bf16.mxu0 0
  %421 = vmatpush2.bf16.msra.mxu0 0
  %422 = vmatprep.subr.bf16.mxu0 0
  %423 = vmatpush2.bf16.msra.mxu0 0
  %424 = vmatprep.subr.bf16.mxu0 0
  %425 = vmatpush2.bf16.msra.mxu0 0
  %426 = vmatprep.mubr.bf16.mxu0 0
  %427 = vmatmul.mubr.bf16.gmra.mxu0 %v271
  %v428 = vpop.f32.mrf.mxu0
  %v429 = vadd.f32 %v326, %v428
  %v430 = vpop.f32.mrf.mxu0
  %v431 = vadd.f32 %v328, %v430
  %v432 = vpop.f32.mrf.mxu0
  %v433 = vadd.f32 %v330, %v432
  %v434 = vpop.f32.mrf.mxu0
  %v435 = vadd.f32 %v332, %v434
  %436 = vmatprep.mubr.bf16.mxu0 0
  %437 = vmatmul.mubr.bf16.gmra.mxu0 %v274
  %v438 = vpop.f32.mrf.mxu0
  %v439 = vadd.f32 %v336, %v438
  %v440 = vpop.f32.mrf.mxu0
  %v441 = vadd.f32 %v338, %v440
  %v442 = vpop.f32.mrf.mxu0
  %v443 = vadd.f32 %v340, %v442
  %v444 = vpop.f32.mrf.mxu0
  %v445 = vadd.f32 %v342, %v444
  %446 = vmatprep.mubr.bf16.mxu0 0
  %447 = vmatmul.mubr.bf16.gmra.mxu0 %v277
  %v448 = vpop.f32.mrf.mxu0
  %v449 = vadd.f32 %v346, %v448
  %v450 = vpop.f32.mrf.mxu0
  %v451 = vadd.f32 %v348, %v450
  %v452 = vpop.f32.mrf.mxu0
  %v453 = vadd.f32 %v350, %v452
  %v454 = vpop.f32.mrf.mxu0
  %v455 = vadd.f32 %v352, %v454
  %456 = vmatprep.mubr.bf16.mxu0 0
  %457 = vmatmul.mubr.bf16.gmra.mxu0 %v280
  %v458 = vpop.f32.mrf.mxu0
  %v459 = vadd.f32 %v356, %v458
  %v460 = vpop.f32.mrf.mxu0
  %v461 = vadd.f32 %v358, %v460
  %v462 = vpop.f32.mrf.mxu0
  %v463 = vadd.f32 %v360, %v462
  %v464 = vpop.f32.mrf.mxu0
  %v465 = vadd.f32 %v362, %v464
  %466 = vmatprep.mubr.bf16.mxu0 0
  %467 = vmatmul.mubr.bf16.gmra.mxu0 %v283
  %v468 = vpop.f32.mrf.mxu0
  %v469 = vadd.f32 %v366, %v468
  %v470 = vpop.f32.mrf.mxu0
  %v471 = vadd.f32 %v368, %v470
  %v472 = vpop.f32.mrf.mxu0
  %v473 = vadd.f32 %v370, %v472
  %v474 = vpop.f32.mrf.mxu0
  %v475 = vadd.f32 %v372, %v474
  %476 = vmatprep.mubr.bf16.mxu0 0
  %477 = vmatmul.mubr.bf16.gmra.mxu0 %v286
  %v478 = vpop.f32.mrf.mxu0
  %v479 = vadd.f32 %v376, %v478
  %v480 = vpop.f32.mrf.mxu0
  %v481 = vadd.f32 %v378, %v480
  %v482 = vpop.f32.mrf.mxu0
  %v483 = vadd.f32 %v380, %v482
  %v484 = vpop.f32.mrf.mxu0
  %v485 = vadd.f32 %v382, %v484
  %486 = vmatprep.mubr.bf16.mxu0 0
  %487 = vmatmul.mubr.bf16.gmra.mxu0 %v289
  %v488 = vpop.f32.mrf.mxu0
  %v489 = vadd.f32 %v386, %v488
  %v490 = vpop.f32.mrf.mxu0
  %v491 = vadd.f32 %v388, %v490
  %v492 = vpop.f32.mrf.mxu0
  %v493 = vadd.f32 %v390, %v492
  %v494 = vpop.f32.mrf.mxu0
  %v495 = vadd.f32 %v392, %v494
  %496 = vdwg.mxu0
  %vm497 = vcmask 556032
  %v498 = vsel %vm497, %v431, 0.0
  %v499 = vadd.f32 %v429, %v498
  %500 = vadd.xlane.f32.xlu0 %v499
  %v501 = vpop.xlane.xlu0 %500
  %v502 = vsel %vm497, %v435, 0.0
  %v503 = vadd.f32 %v433, %v502
  %504 = vadd.xlane.f32.xlu0 %v503
  %v505 = vpop.xlane.xlu0 %504
  %v506 = vsel %vm497, %v441, 0.0
  %v507 = vadd.f32 %v439, %v506
  %508 = vadd.xlane.f32.xlu0 %v507
  %v509 = vpop.xlane.xlu0 %508
  %v510 = vsel %vm497, %v445, 0.0
  %v511 = vadd.f32 %v443, %v510
  %512 = vadd.xlane.f32.xlu0 %v511
  %v513 = vpop.xlane.xlu0 %512
  %v514 = vsel %vm497, %v451, 0.0
  %v515 = vadd.f32 %v449, %v514
  %516 = vadd.xlane.f32.xlu0 %v515
  %v517 = vpop.xlane.xlu0 %516
  %v518 = vsel %vm497, %v455, 0.0
  %v519 = vadd.f32 %v453, %v518
  %520 = vadd.xlane.f32.xlu0 %v519
  %v521 = vpop.xlane.xlu0 %520
  %v522 = vsel %vm497, %v461, 0.0
  %v523 = vadd.f32 %v459, %v522
  %524 = vadd.xlane.f32.xlu0 %v523
  %v525 = vpop.xlane.xlu0 %524
  %v526 = vsel %vm497, %v465, 0.0
  %v527 = vadd.f32 %v463, %v526
  %528 = vadd.xlane.f32.xlu0 %v527
  %v529 = vpop.xlane.xlu0 %528
  %v530 = vsel %vm497, %v471, 0.0
  %v531 = vadd.f32 %v469, %v530
  %532 = vadd.xlane.f32.xlu0 %v531
  %v533 = vpop.xlane.xlu0 %532
  %v534 = vsel %vm497, %v475, 0.0
  %v535 = vadd.f32 %v473, %v534
  %536 = vadd.xlane.f32.xlu0 %v535
  %v537 = vpop.xlane.xlu0 %536
  %v538 = vsel %vm497, %v481, 0.0
  %v539 = vadd.f32 %v479, %v538
  %540 = vadd.xlane.f32.xlu0 %v539
  %v541 = vpop.xlane.xlu0 %540
  %v542 = vsel %vm497, %v485, 0.0
  %v543 = vadd.f32 %v483, %v542
  %544 = vadd.xlane.f32.xlu0 %v543
  %v545 = vpop.xlane.xlu0 %544
  %v546 = vsel %vm497, %v491, 0.0
  %v547 = vadd.f32 %v489, %v546
  %548 = vadd.xlane.f32.xlu0 %v547
  %v549 = vpop.xlane.xlu0 %548
  %v550 = vsel %vm497, %v495, 0.0
  %v551 = vadd.f32 %v493, %v550
  %552 = vadd.xlane.f32.xlu0 %v551
  %v553 = vpop.xlane.xlu0 %552
  %v554 = vmul.f32 %v501, 0.0051020407
  %v555 = vmul.f32 %v505, 0.0051020407
  %v556 = vmul.f32 %v509, 0.0051020407
  %v557 = vmul.f32 %v513, 0.0051020407
  %v558 = vmul.f32 %v517, 0.0051020407
  %v559 = vmul.f32 %v521, 0.0051020407
  %v560 = vmul.f32 %v525, 0.0051020407
  %v561 = vmul.f32 %v529, 0.0051020407
  %v562 = vmul.f32 %v533, 0.0051020407
  %v563 = vmul.f32 %v537, 0.0051020407
  %v564 = vmul.f32 %v541, 0.0051020407
  %v565 = vmul.f32 %v545, 0.0051020407
  %v566 = vmul.f32 %v549, 0.0051020407
  %v567 = vmul.f32 %v553, 0.0051020407
  %v568 = vmul.f32 %v429, %v429
  %v569 = vmul.f32 %v431, %v431
  %v570 = vmul.f32 %v433, %v433
  %v571 = vmul.f32 %v435, %v435
  %v572 = vmul.f32 %v439, %v439
  %v573 = vmul.f32 %v441, %v441
  %v574 = vmul.f32 %v443, %v443
  %v575 = vmul.f32 %v445, %v445
  %v576 = vmul.f32 %v449, %v449
  %v577 = vmul.f32 %v451, %v451
  %v578 = vmul.f32 %v453, %v453
  %v579 = vmul.f32 %v455, %v455
  %v580 = vmul.f32 %v459, %v459
  %v581 = vmul.f32 %v461, %v461
  %v582 = vmul.f32 %v463, %v463
  %v583 = vmul.f32 %v465, %v465
  %v584 = vmul.f32 %v469, %v469
  %v585 = vmul.f32 %v471, %v471
  %v586 = vmul.f32 %v473, %v473
  %v587 = vmul.f32 %v475, %v475
  %v588 = vmul.f32 %v479, %v479
  %v589 = vmul.f32 %v481, %v481
  %v590 = vmul.f32 %v483, %v483
  %v591 = vmul.f32 %v485, %v485
  %v592 = vmul.f32 %v489, %v489
  %v593 = vmul.f32 %v491, %v491
  %v594 = vmul.f32 %v493, %v493
  %v595 = vmul.f32 %v495, %v495
  %v596 = vsel %vm497, %v569, 0.0
  %v597 = vadd.f32 %v568, %v596
  %598 = vadd.xlane.f32.xlu0 %v597
  %v599 = vpop.xlane.xlu0 %598
  %v600 = vsel %vm497, %v571, 0.0
  %v601 = vadd.f32 %v570, %v600
  %602 = vadd.xlane.f32.xlu0 %v601
  %v603 = vpop.xlane.xlu0 %602
  %v604 = vsel %vm497, %v573, 0.0
  %v605 = vadd.f32 %v572, %v604
  %606 = vadd.xlane.f32.xlu0 %v605
  %v607 = vpop.xlane.xlu0 %606
  %v608 = vsel %vm497, %v575, 0.0
  %v609 = vadd.f32 %v574, %v608
  %610 = vadd.xlane.f32.xlu0 %v609
  %v611 = vpop.xlane.xlu0 %610
  %v612 = vsel %vm497, %v577, 0.0
  %v613 = vadd.f32 %v576, %v612
  %614 = vadd.xlane.f32.xlu0 %v613
  %v615 = vpop.xlane.xlu0 %614
  %v616 = vsel %vm497, %v579, 0.0
  %v617 = vadd.f32 %v578, %v616
  %618 = vadd.xlane.f32.xlu0 %v617
  %v619 = vpop.xlane.xlu0 %618
  %v620 = vsel %vm497, %v581, 0.0
  %v621 = vadd.f32 %v580, %v620
  %622 = vadd.xlane.f32.xlu0 %v621
  %v623 = vpop.xlane.xlu0 %622
  %v624 = vsel %vm497, %v583, 0.0
  %v625 = vadd.f32 %v582, %v624
  %626 = vadd.xlane.f32.xlu0 %v625
  %v627 = vpop.xlane.xlu0 %626
  %v628 = vsel %vm497, %v585, 0.0
  %v629 = vadd.f32 %v584, %v628
  %630 = vadd.xlane.f32.xlu0 %v629
  %v631 = vpop.xlane.xlu0 %630
  %v632 = vsel %vm497, %v587, 0.0
  %v633 = vadd.f32 %v586, %v632
  %634 = vadd.xlane.f32.xlu0 %v633
  %v635 = vpop.xlane.xlu0 %634
  %v636 = vsel %vm497, %v589, 0.0
  %v637 = vadd.f32 %v588, %v636
  %638 = vadd.xlane.f32.xlu0 %v637
  %v639 = vpop.xlane.xlu0 %638
  %v640 = vsel %vm497, %v591, 0.0
  %v641 = vadd.f32 %v590, %v640
  %642 = vadd.xlane.f32.xlu0 %v641
  %v643 = vpop.xlane.xlu0 %642
  %v644 = vsel %vm497, %v593, 0.0
  %v645 = vadd.f32 %v592, %v644
  %646 = vadd.xlane.f32.xlu0 %v645
  %v647 = vpop.xlane.xlu0 %646
  %v648 = vsel %vm497, %v595, 0.0
  %v649 = vadd.f32 %v594, %v648
  %650 = vadd.xlane.f32.xlu0 %v649
  %v651 = vpop.xlane.xlu0 %650
  %v652 = vmul.f32 %v599, 0.0051020407
  %v653 = vmul.f32 %v603, 0.0051020407
  %v654 = vmul.f32 %v607, 0.0051020407
  %v655 = vmul.f32 %v611, 0.0051020407
  %v656 = vmul.f32 %v615, 0.0051020407
  %v657 = vmul.f32 %v619, 0.0051020407
  %v658 = vmul.f32 %v623, 0.0051020407
  %v659 = vmul.f32 %v627, 0.0051020407
  %v660 = vmul.f32 %v631, 0.0051020407
  %v661 = vmul.f32 %v635, 0.0051020407
  %v662 = vmul.f32 %v639, 0.0051020407
  %v663 = vmul.f32 %v643, 0.0051020407
  %v664 = vmul.f32 %v647, 0.0051020407
  %v665 = vmul.f32 %v651, 0.0051020407
  %v666 = vmul.f32 %v554, %v554
  %v667 = vmul.f32 %v555, %v555
  %v668 = vmul.f32 %v556, %v556
  %v669 = vmul.f32 %v557, %v557
  %v670 = vmul.f32 %v558, %v558
  %v671 = vmul.f32 %v559, %v559
  %v672 = vmul.f32 %v560, %v560
  %v673 = vmul.f32 %v561, %v561
  %v674 = vmul.f32 %v562, %v562
  %v675 = vmul.f32 %v563, %v563
  %v676 = vmul.f32 %v564, %v564
  %v677 = vmul.f32 %v565, %v565
  %v678 = vmul.f32 %v566, %v566
  %v679 = vmul.f32 %v567, %v567
  %v680 = vsub.f32 %v652, %v666
  %v681 = vsub.f32 %v653, %v667
  %v682 = vsub.f32 %v654, %v668
  %v683 = vsub.f32 %v655, %v669
  %v684 = vsub.f32 %v656, %v670
  %v685 = vsub.f32 %v657, %v671
  %v686 = vsub.f32 %v658, %v672
  %v687 = vsub.f32 %v659, %v673
  %v688 = vsub.f32 %v660, %v674
  %v689 = vsub.f32 %v661, %v675
  %v690 = vsub.f32 %v662, %v676
  %v691 = vsub.f32 %v663, %v677
  %v692 = vsub.f32 %v664, %v678
  %v693 = vsub.f32 %v665, %v679
  %v694 = vadd.f32 %v680, 1e-05
  %v695 = vadd.f32 %v681, 1e-05
  %v696 = vadd.f32 %v682, 1e-05
  %v697 = vadd.f32 %v683, 1e-05
  %v698 = vadd.f32 %v684, 1e-05
  %v699 = vadd.f32 %v685, 1e-05
  %v700 = vadd.f32 %v686, 1e-05
  %v701 = vadd.f32 %v687, 1e-05
  %v702 = vadd.f32 %v688, 1e-05
  %v703 = vadd.f32 %v689, 1e-05
  %v704 = vadd.f32 %v690, 1e-05
  %v705 = vadd.f32 %v691, 1e-05
  %v706 = vadd.f32 %v692, 1e-05
  %v707 = vadd.f32 %v693, 1e-05
  %v708 = vrsqrt.pop %v694
  %v709 = vrsqrt.pop %v695
  %v710 = vrsqrt.pop %v696
  %v711 = vrsqrt.pop %v697
  %v712 = vrsqrt.pop %v698
  %v713 = vrsqrt.pop %v699
  %v714 = vrsqrt.pop %v700
  %v715 = vrsqrt.pop %v701
  %v716 = vrsqrt.pop %v702
  %v717 = vrsqrt.pop %v703
  %v718 = vrsqrt.pop %v704
  %v719 = vrsqrt.pop %v705
  %v720 = vrsqrt.pop %v706
  %v721 = vrsqrt.pop %v707
  %v722 = vld [vmem:[%s3] sm:$0xff]
  %v723 = vld [vmem:[%s3 + $0x8] sm:$0xff]
  %v724 = vld [vmem:[%s3 + $0x10] sm:$0xff]
  %v725 = vld [vmem:[%s3 + $0x18] sm:$0xff]
  %v726 = vld [vmem:[%s3 + $0x20] sm:$0xff]
  %v727 = vld [vmem:[%s3 + $0x28] sm:$0xff]
  %v728 = vld [vmem:[%s3 + $0x30] sm:$0xff]
  %v729 = vld [vmem:[%s3 + $0x38] sm:$0xff]
  %v730 = vld [vmem:[%s3 + $0x40] sm:$0xff]
  %v731 = vld [vmem:[%s3 + $0x48] sm:$0xff]
  %v732 = vld [vmem:[%s3 + $0x50] sm:$0xff]
  %v733 = vld [vmem:[%s3 + $0x58] sm:$0xff]
  %v734 = vld [vmem:[%s3 + $0x60] sm:$0xff]
  %v735 = vld [vmem:[%s3 + $0x68] sm:$0xff]
  %v736 = vmul.f32 %v708, %v722
  %v737 = vmul.f32 %v709, %v723
  %v738 = vmul.f32 %v710, %v724
  %v739 = vmul.f32 %v711, %v725
  %v740 = vmul.f32 %v712, %v726
  %v741 = vmul.f32 %v713, %v727
  %v742 = vmul.f32 %v714, %v728
  %v743 = vmul.f32 %v715, %v729
  %v744 = vmul.f32 %v716, %v730
  %v745 = vmul.f32 %v717, %v731
  %v746 = vmul.f32 %v718, %v732
  %v747 = vmul.f32 %v719, %v733
  %v748 = vmul.f32 %v720, %v734
  %v749 = vmul.f32 %v721, %v735
  %v750 = vld [vmem:[%s4] sm:$0xff]
  %v751 = vld [vmem:[%s4 + $0x8] sm:$0xff]
  %v752 = vld [vmem:[%s4 + $0x10] sm:$0xff]
  %v753 = vld [vmem:[%s4 + $0x18] sm:$0xff]
  %v754 = vld [vmem:[%s4 + $0x20] sm:$0xff]
  %v755 = vld [vmem:[%s4 + $0x28] sm:$0xff]
  %v756 = vld [vmem:[%s4 + $0x30] sm:$0xff]
  %v757 = vld [vmem:[%s4 + $0x38] sm:$0xff]
  %v758 = vld [vmem:[%s4 + $0x40] sm:$0xff]
  %v759 = vld [vmem:[%s4 + $0x48] sm:$0xff]
  %v760 = vld [vmem:[%s4 + $0x50] sm:$0xff]
  %v761 = vld [vmem:[%s4 + $0x58] sm:$0xff]
  %v762 = vld [vmem:[%s4 + $0x60] sm:$0xff]
  %v763 = vld [vmem:[%s4 + $0x68] sm:$0xff]
  %v764 = vmul.f32 %v554, %v736
  %v765 = vmul.f32 %v555, %v737
  %v766 = vmul.f32 %v556, %v738
  %v767 = vmul.f32 %v557, %v739
  %v768 = vmul.f32 %v558, %v740
  %v769 = vmul.f32 %v559, %v741
  %v770 = vmul.f32 %v560, %v742
  %v771 = vmul.f32 %v561, %v743
  %v772 = vmul.f32 %v562, %v744
  %v773 = vmul.f32 %v563, %v745
  %v774 = vmul.f32 %v564, %v746
  %v775 = vmul.f32 %v565, %v747
  %v776 = vmul.f32 %v566, %v748
  %v777 = vmul.f32 %v567, %v749
  %v778 = vsub.f32 %v750, %v764
  %v779 = vsub.f32 %v751, %v765
  %v780 = vsub.f32 %v752, %v766
  %v781 = vsub.f32 %v753, %v767
  %v782 = vsub.f32 %v754, %v768
  %v783 = vsub.f32 %v755, %v769
  %v784 = vsub.f32 %v756, %v770
  %v785 = vsub.f32 %v757, %v771
  %v786 = vsub.f32 %v758, %v772
  %v787 = vsub.f32 %v759, %v773
  %v788 = vsub.f32 %v760, %v774
  %v789 = vsub.f32 %v761, %v775
  %v790 = vsub.f32 %v762, %v776
  %v791 = vsub.f32 %v763, %v777
  %793 = vset.pattern.permute.xlu0 0
  %794 = vperm.xlu0 %793, %v736
  %v795 = vpop.permute.xlu0 %794
  %798 = vset.pattern.permute.xlu0 0
  %799 = vperm.xlu0 %798, %v737
  %v800 = vpop.permute.xlu0 %799
  %803 = vset.pattern.permute.xlu0 0
  %804 = vperm.xlu0 %803, %v738
  %v805 = vpop.permute.xlu0 %804
  %808 = vset.pattern.permute.xlu0 0
  %809 = vperm.xlu0 %808, %v739
  %v810 = vpop.permute.xlu0 %809
  %813 = vset.pattern.permute.xlu0 0
  %814 = vperm.xlu0 %813, %v740
  %v815 = vpop.permute.xlu0 %814
  %818 = vset.pattern.permute.xlu0 0
  %819 = vperm.xlu0 %818, %v741
  %v820 = vpop.permute.xlu0 %819
  %823 = vset.pattern.permute.xlu0 0
  %824 = vperm.xlu0 %823, %v742
  %v825 = vpop.permute.xlu0 %824
  %828 = vset.pattern.permute.xlu0 0
  %829 = vperm.xlu0 %828, %v743
  %v830 = vpop.permute.xlu0 %829
  %833 = vset.pattern.permute.xlu0 0
  %834 = vperm.xlu0 %833, %v744
  %v835 = vpop.permute.xlu0 %834
  %838 = vset.pattern.permute.xlu0 0
  %839 = vperm.xlu0 %838, %v745
  %v840 = vpop.permute.xlu0 %839
  %843 = vset.pattern.permute.xlu0 0
  %844 = vperm.xlu0 %843, %v746
  %v845 = vpop.permute.xlu0 %844
  %848 = vset.pattern.permute.xlu0 0
  %849 = vperm.xlu0 %848, %v747
  %v850 = vpop.permute.xlu0 %849
  %853 = vset.pattern.permute.xlu0 0
  %854 = vperm.xlu0 %853, %v748
  %v855 = vpop.permute.xlu0 %854
  %858 = vset.pattern.permute.xlu0 0
  %859 = vperm.xlu0 %858, %v749
  %v860 = vpop.permute.xlu0 %859
  %v862 = vmul.f32 %v429, %v795
  %v863 = vmul.f32 %v431, %v795
  %v864 = vmul.f32 %v433, %v800
  %v865 = vmul.f32 %v435, %v800
  %v866 = vmul.f32 %v439, %v805
  %v867 = vmul.f32 %v441, %v805
  %v868 = vmul.f32 %v443, %v810
  %v869 = vmul.f32 %v445, %v810
  %v870 = vmul.f32 %v449, %v815
  %v871 = vmul.f32 %v451, %v815
  %v872 = vmul.f32 %v453, %v820
  %v873 = vmul.f32 %v455, %v820
  %v874 = vmul.f32 %v459, %v825
  %v875 = vmul.f32 %v461, %v825
  %v876 = vmul.f32 %v463, %v830
  %v877 = vmul.f32 %v465, %v830
  %v878 = vmul.f32 %v469, %v835
  %v879 = vmul.f32 %v471, %v835
  %v880 = vmul.f32 %v473, %v840
  %v881 = vmul.f32 %v475, %v840
  %v882 = vmul.f32 %v479, %v845
  %v883 = vmul.f32 %v481, %v845
  %v884 = vmul.f32 %v483, %v850
  %v885 = vmul.f32 %v485, %v850
  %v886 = vmul.f32 %v489, %v855
  %v887 = vmul.f32 %v491, %v855
  %v888 = vmul.f32 %v493, %v860
  %v889 = vmul.f32 %v495, %v860
  %891 = vset.pattern.permute.xlu0 0
  %892 = vperm.xlu0 %891, %v778
  %v893 = vpop.permute.xlu0 %892
  %896 = vset.pattern.permute.xlu0 0
  %897 = vperm.xlu0 %896, %v779
  %v898 = vpop.permute.xlu0 %897
  %901 = vset.pattern.permute.xlu0 0
  %902 = vperm.xlu0 %901, %v780
  %v903 = vpop.permute.xlu0 %902
  %906 = vset.pattern.permute.xlu0 0
  %907 = vperm.xlu0 %906, %v781
  %v908 = vpop.permute.xlu0 %907
  %911 = vset.pattern.permute.xlu0 0
  %912 = vperm.xlu0 %911, %v782
  %v913 = vpop.permute.xlu0 %912
  %916 = vset.pattern.permute.xlu0 0
  %917 = vperm.xlu0 %916, %v783
  %v918 = vpop.permute.xlu0 %917
  %921 = vset.pattern.permute.xlu0 0
  %922 = vperm.xlu0 %921, %v784
  %v923 = vpop.permute.xlu0 %922
  %926 = vset.pattern.permute.xlu0 0
  %927 = vperm.xlu0 %926, %v785
  %v928 = vpop.permute.xlu0 %927
  %931 = vset.pattern.permute.xlu0 0
  %932 = vperm.xlu0 %931, %v786
  %v933 = vpop.permute.xlu0 %932
  %936 = vset.pattern.permute.xlu0 0
  %937 = vperm.xlu0 %936, %v787
  %v938 = vpop.permute.xlu0 %937
  %941 = vset.pattern.permute.xlu0 0
  %942 = vperm.xlu0 %941, %v788
  %v943 = vpop.permute.xlu0 %942
  %946 = vset.pattern.permute.xlu0 0
  %947 = vperm.xlu0 %946, %v789
  %v948 = vpop.permute.xlu0 %947
  %951 = vset.pattern.permute.xlu0 0
  %952 = vperm.xlu0 %951, %v790
  %v953 = vpop.permute.xlu0 %952
  %956 = vset.pattern.permute.xlu0 0
  %957 = vperm.xlu0 %956, %v791
  %v958 = vpop.permute.xlu0 %957
  %v960 = vadd.f32 %v862, %v893
  %v961 = vadd.f32 %v863, %v893
  %v962 = vadd.f32 %v864, %v898
  %v963 = vadd.f32 %v865, %v898
  %v964 = vadd.f32 %v866, %v903
  %v965 = vadd.f32 %v867, %v903
  %v966 = vadd.f32 %v868, %v908
  %v967 = vadd.f32 %v869, %v908
  %v968 = vadd.f32 %v870, %v913
  %v969 = vadd.f32 %v871, %v913
  %v970 = vadd.f32 %v872, %v918
  %v971 = vadd.f32 %v873, %v918
  %v972 = vadd.f32 %v874, %v923
  %v973 = vadd.f32 %v875, %v923
  %v974 = vadd.f32 %v876, %v928
  %v975 = vadd.f32 %v877, %v928
  %v976 = vadd.f32 %v878, %v933
  %v977 = vadd.f32 %v879, %v933
  %v978 = vadd.f32 %v880, %v938
  %v979 = vadd.f32 %v881, %v938
  %v980 = vadd.f32 %v882, %v943
  %v981 = vadd.f32 %v883, %v943
  %v982 = vadd.f32 %v884, %v948
  %v983 = vadd.f32 %v885, %v948
  %v984 = vadd.f32 %v886, %v953
  %v985 = vadd.f32 %v887, %v953
  %v986 = vadd.f32 %v888, %v958
  %v987 = vadd.f32 %v889, %v958
  %988 = vst [vmem:[%s5] sm:$0xff] %v960
  %989 = vst.msk [vmem:[%s5 + $0x8] sm:$0xff] %vm497, %v961
  %990 = vst [vmem:[%s5 + $0x10] sm:$0xff] %v962
  %991 = vst.msk [vmem:[%s5 + $0x18] sm:$0xff] %vm497, %v963
  %992 = vst [vmem:[%s5 + $0x20] sm:$0xff] %v964
  %993 = vst.msk [vmem:[%s5 + $0x28] sm:$0xff] %vm497, %v965
  %994 = vst [vmem:[%s5 + $0x30] sm:$0xff] %v966
  %995 = vst.msk [vmem:[%s5 + $0x38] sm:$0xff] %vm497, %v967
  %996 = vst [vmem:[%s5 + $0x40] sm:$0xff] %v968
  %997 = vst.msk [vmem:[%s5 + $0x48] sm:$0xff] %vm497, %v969
  %998 = vst [vmem:[%s5 + $0x50] sm:$0xff] %v970
  %999 = vst.msk [vmem:[%s5 + $0x58] sm:$0xff] %vm497, %v971
  %1000 = vst [vmem:[%s5 + $0x60] sm:$0xff] %v972
  %1001 = vst.msk [vmem:[%s5 + $0x68] sm:$0xff] %vm497, %v973
  %1002 = vst [vmem:[%s5 + $0x70] sm:$0xff] %v974
  %1003 = vst.msk [vmem:[%s5 + $0x78] sm:$0xff] %vm497, %v975
  %1004 = vst [vmem:[%s5 + $0x80] sm:$0xff] %v976
  %1005 = vst.msk [vmem:[%s5 + $0x88] sm:$0xff] %vm497, %v977
  %1006 = vst [vmem:[%s5 + $0x90] sm:$0xff] %v978
  %1007 = vst.msk [vmem:[%s5 + $0x98] sm:$0xff] %vm497, %v979
  %1008 = vst [vmem:[%s5 + $0xa0] sm:$0xff] %v980
  %1009 = vst.msk [vmem:[%s5 + $0xa8] sm:$0xff] %vm497, %v981
  %1010 = vst [vmem:[%s5 + $0xb0] sm:$0xff] %v982
  %1011 = vst.msk [vmem:[%s5 + $0xb8] sm:$0xff] %vm497, %v983
  %1012 = vst [vmem:[%s5 + $0xc0] sm:$0xff] %v984
  %1013 = vst.msk [vmem:[%s5 + $0xc8] sm:$0xff] %vm497, %v985
  %1014 = vst [vmem:[%s5 + $0xd0] sm:$0xff] %v986
  %1015 = vst.msk [vmem:[%s5 + $0xd8] sm:$0xff] %vm497, %v987
  // Predicated region
  $region22: #{tpu_custom_call.1} parent=0 // pred_check
    _
  $region23: #{tpu_custom_call.1} parent=0 // pred_check_branch
    %1017 = sbr.rel (0) target = $region25
  $region24: #{tpu_custom_call.1} parent=0 // pred_region
    _
  $region25: #{tpu_custom_call.1} parent=0 // pred_fallthru
    _
  // Predicated region
  $region26: #{tpu_custom_call.1} parent=0 // pred_check
    _
  $region27: #{tpu_custom_call.1} parent=0 // pred_check_branch
    %1019 = sbr.rel (0) target = $region29
  $region28: #{tpu_custom_call.1} parent=0 // pred_region
    _
  $region29: #{tpu_custom_call.1} parent=0 // pred_fallthru
    _

</llo_original>
